<compile_context>
chip_gen: v7x
topology: tpu7x:2x2x1
jax: 0.10.0
libtpu: 0.0.40
codegen_flags: <defaults>
</compile_context>

<pallas_src>
import functools

import jax
import jax.numpy as jnp
from jax import lax
from jax.experimental import pallas as pl
from jax.experimental.pallas import tpu as pltpu

_LANE = 128
_SUBLANE = 8

# Optionally cast f32 activations to bf16 at the kernel boundary (halves the
# dominant HBM read stream; mainly pays on v5e's ~0.8 TB/s HBM).  Off by
# default because it changes numerics vs. the f32 reference.
_CAST_INPUT_TO_BF16 = False


def _vmem_budget_and_limit():
    """Per-generation VMEM budget: ~110 MiB on v5e/v6e (128 MiB), ~56 MiB on v7x."""
    try:
        cap = int(pltpu.get_tpu_info().vmem_capacity_bytes)
    except Exception:  # query unavailable -> assume the tightest case (v7x, 64 MiB)
        cap = 64 * 1024 * 1024
    limit = max(min(cap - (8 << 20), 110 << 20), 32 << 20)
    budget = limit - (8 << 20)  # headroom for Mosaic internal scratch
    return budget, limit


def _plan(n, m, itemsize):
    """Pick (tn, grid_rows, tm, m_tiles, needs_mask, vmem_limit).

    Preference order (per perf review):
      * tn == n  -> the X slab is streamed from HBM exactly once.
      * tm == m  -> single reduction step when the full-M tile fits VMEM,
        otherwise the largest 128-multiple that fits (ragged tail masked
        in-kernel; X is never padded/copied in HBM).
    """
    budget, limit = _vmem_budget_and_limit()
    tn, grid_rows = n, 1
    while True:
        # Resident f32 buffers: acc scratch + double-buffered target/out blocks.
        fixed = 4 * tn * n * 4 + (64 << 10)
        rhs_budget = budget - fixed
        tm_max = rhs_budget // (2 * n * itemsize) if rhs_budget > 0 else 0
        if tm_max >= min(m, _LANE):
            break
        new_tn = tn // 2
        if new_tn < _SUBLANE or n % new_tn != 0 or new_tn % _SUBLANE != 0:
            # TODO(synk): add an N-blocked (both-operand tiled) fallback for
            # feature matrices whose full-N column tile cannot fit VMEM.
            raise ValueError(
                "StyleLoss Pallas kernel: feature matrix too large for VMEM "
                f"(N={n}, M={m}, itemsize={itemsize}).")
        tn, grid_rows = new_tn, n // new_tn   # NOTE: X gets re-read grid_rows times
    if m <= tm_max:
        tm, m_tiles, needs_mask = m, 1, False
    else:
        tm = max((tm_max // _LANE) * _LANE, _LANE)
        m_tiles = -(-m // tm)
        needs_mask = (m % tm) != 0
    return tn, grid_rows, tm, m_tiles, needs_mask, limit


def _features(x_nchw):
    b, c, h, w = x_nchw.shape
    feats = x_nchw.reshape(b * c, h * w)   # no HBM pad copy
    if _CAST_INPUT_TO_BF16 and feats.dtype == jnp.float32:
        feats = feats.astype(jnp.bfloat16)
    return feats


def _load_tiles(x_ref, *, tn, n, m, tm, grid_rows, needs_mask):
    """Load the (n, tm) column tile; derive the (tn, tm) LHS row block from it."""
    k = pl.program_id(1)
    x = x_ref[...]                                   # (n, tm)
    if needs_mask:                                   # zero out-of-bounds tail cols
        valid = m - k * tm
        col = lax.broadcasted_iota(jnp.int32, x.shape, 1)
        x = jnp.where(col < valid, x, 0)
    if grid_rows == 1:
        xl = x                                       # LHS is the whole tile (tn == n)
    else:
        i = pl.program_id(0)
        xl = x_ref[pl.ds(pl.multiple_of(i * tn, tn), tn), :]
        if needs_mask:
            coll = lax.broadcasted_iota(jnp.int32, xl.shape, 1)
            xl = jnp.where(coll < (m - k * tm), xl, 0)
    return xl, x


def _nt_dot(xl, xr):
    # (tn, tm) x (n, tm) contracted on the last dims -> (tn, n).  NT form: no
    # explicit transpose; inputs stay in their HBM dtype with f32 accumulation.
    return lax.dot_general(
        xl, xr,
        dimension_numbers=(((1,), (1,)), ((), ())),
        preferred_element_type=jnp.float32)


# ----------------------------------------------------------------------------
# Gram matrix kernel: G = (X @ X.T) / (N*M), accumulated directly into the f32
# output block over M-tiles.  Grid = (row_blocks [parallel], m_tiles [arbitrary]).
# ----------------------------------------------------------------------------
def _gram_kernel(x_ref, g_ref, *, tn, n, m, tm, grid_rows, needs_mask, inv_norm):
    k = pl.program_id(1)
    xl, xr = _load_tiles(x_ref, tn=tn, n=n, m=m, tm=tm,
                         grid_rows=grid_rows, needs_mask=needs_mask)

    @pl.when(k == 0)
    def _():
        g_ref[...] = jnp.zeros_like(g_ref)

    g_ref[...] += _nt_dot(xl, xr)

    @pl.when(k == pl.num_programs(1) - 1)
    def _():
        g_ref[...] = g_ref[...] * inv_norm


def gram_matrix(x_nchw):
    b, c, h, w = x_nchw.shape
    n, m = b * c, h * w
    feats = _features(x_nchw)
    itemsize = jnp.dtype(feats.dtype).itemsize
    tn, grid_rows, tm, m_tiles, needs_mask, vmem_limit = _plan(n, m, itemsize)

    return pl.pallas_call(
        functools.partial(_gram_kernel, tn=tn, n=n, m=m, tm=tm,
                          grid_rows=grid_rows, needs_mask=needs_mask,
                          inv_norm=1.0 / float(n * m)),
        out_shape=jax.ShapeDtypeStruct((n, n), jnp.float32),
        grid_spec=pltpu.PrefetchScalarGridSpec(
            num_scalar_prefetch=0,
            grid=(grid_rows, m_tiles),
            in_specs=[
                # Single input stream: full-N column tile of X; the LHS row
                # block is sliced from this resident tile in-kernel.
                pl.BlockSpec((n, tm), lambda i, k: (0, k)),
            ],
            out_specs=pl.BlockSpec((tn, n), lambda i, k: (i, 0)),
        ),
        compiler_params=pltpu.CompilerParams(
            dimension_semantics=("parallel", "arbitrary"),
            vmem_limit_bytes=vmem_limit),
    )(feats)


# ----------------------------------------------------------------------------
# Fused forward kernel: accumulate Gram over M-tiles, then on the last step of
# each row block emit the partial sum of (G*weight - target)^2 as an (8,128)
# broadcast block.  The wrapper picks element [0] of each block and divides by
# the true N*N.
# ----------------------------------------------------------------------------
def _style_loss_kernel(x_ref, tgt_ref, part_ref, acc_ref, *,
                       tn, n, m, tm, grid_rows, needs_mask, inv_norm_w):
    k = pl.program_id(1)
    xl, xr = _load_tiles(x_ref, tn=tn, n=n, m=m, tm=tm,
                         grid_rows=grid_rows, needs_mask=needs_mask)

    @pl.when(k == 0)
    def _():
        acc_ref[...] = jnp.zeros_like(acc_ref)

    acc_ref[...] += _nt_dot(xl, xr)

    @pl.when(k == pl.num_programs(1) - 1)
    def _():
        # inv_norm_w = weight / (N*M): normalization and weight fused.
        diff = acc_ref[...] * inv_norm_w - tgt_ref[...]
        sq = diff * diff
        total = jnp.sum(jnp.sum(sq, axis=1, keepdims=True), axis=0, keepdims=True)
        part_ref[...] = jnp.broadcast_to(total, part_ref.shape)


def style_loss_forward(x_nchw, target, weight):
    b, c, h, w = x_nchw.shape
    n, m = b * c, h * w
    feats = _features(x_nchw)
    itemsize = jnp.dtype(feats.dtype).itemsize
    tn, grid_rows, tm, m_tiles, needs_mask, vmem_limit = _plan(n, m, itemsize)
    if target.dtype != jnp.float32:           # no-op for the cached f32 target
        target = target.astype(jnp.float32)

    parts = pl.pallas_call(
        functools.partial(_style_loss_kernel, tn=tn, n=n, m=m, tm=tm,
                          grid_rows=grid_rows, needs_mask=needs_mask,
                          inv_norm_w=float(weight) / float(n * m)),
        out_shape=jax.ShapeDtypeStruct((grid_rows * _SUBLANE, _LANE), jnp.float32),
        grid_spec=pltpu.PrefetchScalarGridSpec(
            num_scalar_prefetch=0,
            grid=(grid_rows, m_tiles),
            in_specs=[
                pl.BlockSpec((n, tm), lambda i, k: (0, k)),   # X column tile (only stream)
                pl.BlockSpec((tn, n), lambda i, k: (i, 0)),   # target row block (k-resident)
            ],
            out_specs=pl.BlockSpec((_SUBLANE, _LANE), lambda i, k: (i, 0)),
            scratch_shapes=[pltpu.VMEM((tn, n), jnp.float32)],
        ),
        compiler_params=pltpu.CompilerParams(
            dimension_semantics=("parallel", "arbitrary"),
            vmem_limit_bytes=vmem_limit),
    )(feats, target)

    # Each (8,128) partial block is a broadcast of one row-block's scalar sum.
    loss = jnp.sum(parts[::_SUBLANE, 0]) / float(n * n)
    # forward() returns its input unchanged; the loss is a side result.
    return x_nchw, loss


# ----------------------------------------------------------------------------
# Module-equivalent wrapper (init computes target gram * weight, like PyTorch).
# Target is cached in kernel-ready f32 layout so forward does no per-call
# pad/astype work.
# ----------------------------------------------------------------------------
class StyleLoss:
    def __init__(self, target_feature, weight):
        self.weight = float(weight)
        self.target = (gram_matrix(target_feature) * self.weight).astype(jnp.float32)
        self.loss = jnp.float32(0.0)  # mse_loss(target, target) == 0

    def __call__(self, x):
        out, loss = style_loss_forward(x, self.target, self.weight)
        self.loss = loss
        return out


def _ref_gram(x):
    b, c, h, w = x.shape
    f = x.reshape(b * c, h * w).astype(jnp.float32)
    return (f @ f.T) / float(b * c * h * w)


if __name__ == "__main__":
    key = jax.random.PRNGKey(0)
    k1, k2 = jax.random.split(key)

    B, C, H, W = 2, 4, 16, 16
    weight = 1000.0
    target_feature = jax.random.normal(k1, (B, C, H, W), dtype=jnp.float32)
    x = jax.random.normal(k2, (B, C, H, W), dtype=jnp.float32)

    module = StyleLoss(target_feature, weight)
    out = module(x)
    out = jax.block_until_ready(out)
    loss = jax.block_until_ready(module.loss)

    # reference check
    ref_target = _ref_gram(target_feature) * weight
    ref_loss = jnp.mean((_ref_gram(x) * weight - ref_target) ** 2)

    assert out.shape == x.shape
    assert jnp.allclose(out, x), "forward must return input unchanged"
    assert jnp.allclose(loss, ref_loss, rtol=1e-4, atol=1e-4), (loss, ref_loss)

    print("KERNEL_OK")
</pallas_src>

<mosaic_0001>
module attributes {stable_mosaic.version = 11 : i64} {
  func.func @_gram_kernel(%arg0: i32, %arg1: i32, %arg2: memref<8x256xf32, #tpu.memory_space<vmem>>, %arg3: memref<8x8xf32, #tpu.memory_space<vmem>>) attributes {dimension_semantics = [#tpu.dimension_semantics<parallel>, #tpu.dimension_semantics<arbitrary>], iteration_bounds = array<i64: 1, 1>, scalar_prefetch = 0 : i64, scratch_operands = 0 : i64, tpu.core_type = #tpu.core_type<tc>, window_params = [{transform_indices = @transform_0, window_bounds = array<i64: 8, 256>}, {transform_indices = @transform_1, window_bounds = array<i64: 8, 8>}]} {
    %c0 = arith.constant 0 : index
    %c0_0 = arith.constant 0 : index
    %0 = vector.load %arg2[%c0, %c0_0] : memref<8x256xf32, #tpu.memory_space<vmem>>, vector<8x256xf32>
    %c0_i32 = arith.constant 0 : i32
    %1 = arith.cmpi eq, %arg1, %c0_i32 : i32
    %2 = arith.extui %1 : i1 to i32
    %c0_i32_1 = arith.constant 0 : i32
    %3 = arith.cmpi ne, %2, %c0_i32_1 : i32
    scf.if %3 {
      %cst_8 = arith.constant 0.000000e+00 : f32
      %11 = vector.broadcast %cst_8 : f32 to vector<8x8xf32>
      %c0_9 = arith.constant 0 : index
      %c0_10 = arith.constant 0 : index
      %12 = vector.load %arg3[%c0_9, %c0_10] : memref<8x8xf32, #tpu.memory_space<vmem>>, vector<8x8xf32>
      tpu.vector_store %arg3[%c0_9, %c0_10], %11 {strides = array<i32>} : memref<8x8xf32, #tpu.memory_space<vmem>>, vector<8x8xf32>,
    } else {
    }
    %c0_2 = arith.constant 0 : index
    %c0_3 = arith.constant 0 : index
    %4 = vector.load %arg3[%c0_2, %c0_3] : memref<8x8xf32, #tpu.memory_space<vmem>>, vector<8x8xf32>
    %cst = arith.constant dense<0.000000e+00> : vector<8x8xf32>
    %5 = tpu.matmul %0, %0, %cst {dimension_numbers = #tpu.dot_dimension_numbers<[1], [1], [0], [0], [0, 0, 1, 0], [], []>} : vector<8x256xf32>, vector<8x256xf32>, vector<8x8xf32> -> vector<8x8xf32>
    %6 = arith.addf %4, %5 : vector<8x8xf32>
    %c0_4 = arith.constant 0 : index
    %c0_5 = arith.constant 0 : index
    %7 = vector.load %arg3[%c0_4, %c0_5] : memref<8x8xf32, #tpu.memory_space<vmem>>, vector<8x8xf32>
    tpu.vector_store %arg3[%c0_4, %c0_5], %6 {strides = array<i32>} : memref<8x8xf32, #tpu.memory_space<vmem>>, vector<8x8xf32>,
    %c0_i32_6 = arith.constant 0 : i32
    %8 = arith.cmpi eq, %arg1, %c0_i32_6 : i32
    %9 = arith.extui %8 : i1 to i32
    %c0_i32_7 = arith.constant 0 : i32
    %10 = arith.cmpi ne, %9, %c0_i32_7 : i32
    scf.if %10 {
      %c0_8 = arith.constant 0 : index
      %c0_9 = arith.constant 0 : index
      %11 = vector.load %arg3[%c0_8, %c0_9] : memref<8x8xf32, #tpu.memory_space<vmem>>, vector<8x8xf32>
      %cst_10 = arith.constant 4.8828125E-4 : f32
      %12 = vector.broadcast %cst_10 : f32 to vector<8x8xf32>
      %13 = arith.mulf %11, %12 : vector<8x8xf32>
      %c0_11 = arith.constant 0 : index
      %c0_12 = arith.constant 0 : index
      %14 = vector.load %arg3[%c0_11, %c0_12] : memref<8x8xf32, #tpu.memory_space<vmem>>, vector<8x8xf32>
      tpu.vector_store %arg3[%c0_11, %c0_12], %13 {strides = array<i32>} : memref<8x8xf32, #tpu.memory_space<vmem>>, vector<8x8xf32>,
    } else {
    }
    return
  }
  func.func @transform_0(%arg0: i32, %arg1: i32) -> (i32, i32) {
    %c0_i32 = arith.constant 0 : i32
    %c0_i32_0 = arith.constant 0 : i32
    return %c0_i32, %arg1 : i32, i32
  }
  func.func @transform_1(%arg0: i32, %arg1: i32) -> (i32, i32) {
    %c0_i32 = arith.constant 0 : i32
    %c0_i32_0 = arith.constant 0 : i32
    return %arg0, %c0_i32 : i32, i32
  }
}

</mosaic_0001>

<llo_original>
// kernel: tpu_custom_call.1
$region0: #{tpu_custom_call.1}
  #allocation0 [shape = 'u32[]', space=smem, size = 0x4, offset = 0x4, fixed_abs, tag = 'smem constant byte address 0x4 - core index']
  #allocation1 [shape = 'u32[144,128]{1,0:T(1,128)}', space=vmem, size = 0x12000, scoped, tag = 'internal scratch']
  %s0 = inlined_call_operand.hbm [shape: f32[8,256], index: 0, kind: input, shape index: {}]
  %s1 = inlined_call_operand.hbm [shape: f32[8,8], index: 1, kind: output, shape index: {}]
  %s2 = sld [smem:[#allocation0]]
  $region26: #{tpu_custom_call.1} parent=0
    _
  %s4 = ssub.s32 1, %s2
  %s5 = scalar_select 0, %s4, %s2
  $region1: #{tpu_custom_call.1} parent=0
    #allocation2 [shape = 'u8[8192]{0}', space=vmem, size = 0x2000, scoped, tag = 'input window, operand 0, single buffered']
    #allocation3 [shape = 's32[1]{0}', space=sflag, size = 0x4, scoped, tag = 'scoped memory for tpu_custom_call.1']
    #allocation4 [shape = 's32[1]{0}', space=sflag, size = 0x4, scoped, tag = 'scoped memory for tpu_custom_call.1']
    #allocation5 [shape = 'u8[4096]{0}', space=vmem, size = 0x1000, scoped, tag = 'output window, operand 0, single buffered']
    %6 = vsyncpa [#allocation3], 0
    %7 = vsyncpa [#allocation4], 0
    // Predicated region
    $region2: #{tpu_custom_call.1} parent=1 // pred_check
      _
    $region3: #{tpu_custom_call.1} parent=1 // pred_check_branch
      %9 = sbr.rel (0) target = $region5
    $region4: #{tpu_custom_call.1} parent=1 // pred_region
      %s11 = ssub.s32 256, 256
      %12 = vsyncadd [#allocation3], %s11
      %s14 = sshll.u32 [#allocation2], 4
      %s15 = int_to_ptr.vmem [resolvable:$true] %s14
      %17 = dma.hbm_to_vmem [thread:$0]  %s0, 256, %s15, [#allocation3]
    $region5: #{tpu_custom_call.1} parent=1 // pred_fallthru
      _
    // Predicated region
    $region6: #{tpu_custom_call.1} parent=1 // pred_check
      _
    $region7: #{tpu_custom_call.1} parent=1 // pred_check_branch
      %19 = sbr.rel (0) target = $region9
    $region8: #{tpu_custom_call.1} parent=1 // pred_region
      %20 = dma.done [#allocation3], 256
    $region9: #{tpu_custom_call.1} parent=1 // pred_fallthru
      _
    %v21 = vld [vmem:[#allocation2] sm:$0xff]
    %v22 = vld [vmem:[#allocation2 + $0x8] sm:$0xff]
    %p23 = scmp.eq.s32.totalorder 0, 0
    // Predicated region
    $region10: #{tpu_custom_call.1} parent=1 // pred_check
      %p24 = pneg %p23
    $region11: #{tpu_custom_call.1} parent=1 // pred_check_branch
      %26 = sbr.rel (%p24) target = $region13
    $region12: #{tpu_custom_call.1} parent=1 // pred_region
      %vm27 = vcmask 64512
      %28 = vst.msk [vmem:[#allocation5] sm:$0xff] %vm27, 0.0
    $region13: #{tpu_custom_call.1} parent=1 // pred_fallthru
      _
    %v29 = vld [vmem:[#allocation5] sm:$0xff]
    %30 = vmatprep.subr.mxu0 %v22
    %31 = vmatpush1.xpose.msra.mxu0 %v21
    %32 = vmatprep.subr.mxu0 0.0
    %33 = vmatpush1.xpose.msra.mxu0 0.0
    %34 = vmatprep.subr.mxu0 0.0
    %35 = vmatpush1.xpose.msra.mxu0 0.0
    %36 = vmatprep.subr.mxu0 0.0
    %37 = vmatpush1.xpose.msra.mxu0 0.0
    %38 = vmatprep.subr.mxu0 0.0
    %39 = vmatpush1.xpose.msra.mxu0 0.0
    %40 = vmatprep.subr.mxu0 0.0
    %41 = vmatpush1.xpose.msra.mxu0 0.0
    %42 = vmatprep.subr.mxu0 0.0
    %43 = vmatpush1.xpose.msra.mxu0 0.0
    %44 = vmatprep.subr.mxu0 0.0
    %45 = vmatpush1.xpose.msra.mxu0 0.0
    %46 = vmatprep.subr.mxu0 0.0
    %47 = vmatpush1.xpose.msra.mxu0 0.0
    %48 = vmatprep.subr.mxu0 0.0
    %49 = vmatpush1.xpose.msra.mxu0 0.0
    %50 = vmatprep.subr.mxu0 0.0
    %51 = vmatpush1.xpose.msra.mxu0 0.0
    %52 = vmatprep.subr.mxu0 0.0
    %53 = vmatpush1.xpose.msra.mxu0 0.0
    %54 = vmatprep.subr.mxu0 0.0
    %55 = vmatpush1.xpose.msra.mxu0 0.0
    %56 = vmatprep.subr.mxu0 0.0
    %57 = vmatpush1.xpose.msra.mxu0 0.0
    %58 = vmatprep.subr.mxu0 0.0
    %59 = vmatpush1.xpose.msra.mxu0 0.0
    %60 = vmatprep.subr.mxu0 0.0
    %61 = vmatpush1.xpose.msra.mxu0 0.0
    %62 = vmatprep.subr.mxu0 0.0
    %63 = vmatpush1.xpose.msra.mxu0 0.0
    %64 = vmatprep.subr.mxu0 0.0
    %65 = vmatpush1.xpose.msra.mxu0 0.0
    %66 = vmatprep.subr.mxu0 0.0
    %67 = vmatpush1.xpose.msra.mxu0 0.0
    %68 = vmatprep.subr.mxu0 0.0
    %69 = vmatpush1.xpose.msra.mxu0 0.0
    %70 = vmatprep.subr.mxu0 0.0
    %71 = vmatpush1.xpose.msra.mxu0 0.0
    %72 = vmatprep.subr.mxu0 0.0
    %73 = vmatpush1.xpose.msra.mxu0 0.0
    %74 = vmatprep.subr.mxu0 0.0
    %75 = vmatpush1.xpose.msra.mxu0 0.0
    %76 = vmatprep.subr.mxu0 0.0
    %77 = vmatpush1.xpose.msra.mxu0 0.0
    %78 = vmatprep.subr.mxu0 0.0
    %79 = vmatpush1.xpose.msra.mxu0 0.0
    %80 = vmatprep.subr.mxu0 0.0
    %81 = vmatpush1.xpose.msra.mxu0 0.0
    %82 = vmatprep.subr.mxu0 0.0
    %83 = vmatpush1.xpose.msra.mxu0 0.0
    %84 = vmatprep.subr.mxu0 0.0
    %85 = vmatpush1.xpose.msra.mxu0 0.0
    %86 = vmatprep.subr.mxu0 0.0
    %87 = vmatpush1.xpose.msra.mxu0 0.0
    %88 = vmatprep.subr.mxu0 0.0
    %89 = vmatpush1.xpose.msra.mxu0 0.0
    %90 = vmatprep.subr.mxu0 0.0
    %91 = vmatpush1.xpose.msra.mxu0 0.0
    %92 = vmatprep.subr.mxu0 0.0
    %93 = vmatpush1.xpose.msra.mxu0 0.0
    %94 = vmatprep.mubr.f32.mxu0 %v22
    %95 = vmatmul.mubr.f32.gmra.mrb[0].mxu0 %v21
    %v96 = vpop.f32.mrb[0].mxu0
    %v97 = vadd.f32 0.0, %v96
    %v98 = vpop.f32.mrb[0].mxu0
    %99 = vdwg.mxu0
    %v100 = vadd.f32 %v29, %v97
    %vm101 = vcmask 64512
    %102 = vst.msk [vmem:[#allocation5] sm:$0xff] %vm101, %v100
    // Predicated region
    $region14: #{tpu_custom_call.1} parent=1 // pred_check
      %p103 = pneg %p23
    $region15: #{tpu_custom_call.1} parent=1 // pred_check_branch
      %105 = sbr.rel (%p103) target = $region17
    $region16: #{tpu_custom_call.1} parent=1 // pred_region
      %v106 = vld [vmem:[#allocation5] sm:$0xff]
      %v107 = vmul.f32 %v106, 0.00048828125
      %108 = vst.msk [vmem:[#allocation5] sm:$0xff] %vm101, %v107
    $region17: #{tpu_custom_call.1} parent=1 // pred_fallthru
      _
    // Predicated region
    $region18: #{tpu_custom_call.1} parent=1 // pred_check
      _
    $region19: #{tpu_custom_call.1} parent=1 // pred_check_branch
      %110 = sbr.rel (0) target = $region21
    $region20: #{tpu_custom_call.1} parent=1 // pred_region
      %s112 = ssub.s32 128, 128
      %113 = vsyncadd [#allocation4], %s112
      %s115 = sshll.u32 [#allocation5], 4
      %s116 = int_to_ptr.vmem [resolvable:$true] %s115
      %118 = dma.vmem_to_hbm [thread:$0]  %s116, 128, %s1, [#allocation4]
    $region21: #{tpu_custom_call.1} parent=1 // pred_fallthru
      _
    // Predicated region
    $region22: #{tpu_custom_call.1} parent=1 // pred_check
      _
    $region23: #{tpu_custom_call.1} parent=1 // pred_check_branch
      %120 = sbr.rel (0) target = $region25
    $region24: #{tpu_custom_call.1} parent=1 // pred_region
      %121 = dma.done [#allocation4], 128
    $region25: #{tpu_custom_call.1} parent=1 // pred_fallthru
      _
    %122 = vsyncpa [#allocation3], 1
    %123 = vsyncpa [#allocation4], 1

</llo_original>
